<compile_context>
chip_gen: v7x
topology: tpu7x:2x2x1
jax: 0.10.0
libtpu: 0.0.40
codegen_flags: <defaults>
</compile_context>

<pallas_src>
import functools
import math

import jax
import jax.numpy as jnp
from jax.experimental import pallas as pl
from jax.experimental.pallas import tpu as pltpu

_EPS = 1e-12


def _cdiv(a, b):
    return (a + b - 1) // b


def _round_down(x, m):
    return (x // m) * m


def _default_num_core_splits():
    # 2 TensorCores per chip on v7x; v5e / v6e have a single TC, where a
    # 2-way "parallel" axis is just a sequential split that buys nothing.
    try:
        kind = jax.devices()[0].device_kind.lower()
    except Exception:
        return 1
    return 2 if "v7" in kind else 1


def _bce_kernel(inner_steps, block_rows, valid_rows, needs_tail_mask, with_mask,
                pw_ref, logits_ref, target_ref, *rest):
    if with_mask:
        (mask_ref, loss_out_ref, msum_out_ref,
         acc_loss_ref, acc_mask_ref) = rest
    else:
        loss_out_ref, acc_loss_ref = rest
        mask_ref = msum_out_ref = acc_mask_ref = None

    c = pl.program_id(0)          # leading "parallel" (core-split) axis
    i = pl.program_id(1)          # inner "arbitrary" reduction axis

    @pl.when(i == 0)
    def _init():
        acc_loss_ref[...] = jnp.zeros_like(acc_loss_ref)
        if with_mask:
            acc_mask_ref[...] = jnp.zeros_like(acc_mask_ref)

    # Native-dtype tiles are cast to f32 on the VPU (no HBM cost).
    p = logits_ref[...].astype(jnp.float32)
    t = target_ref[...].astype(jnp.float32)

    # Fold the leading negation into the scalar (and into (t - 1)).
    npw = -pw_ref[0]
    # NOTE: (1.0 - p) + eps kept as two ops on purpose: folding to
    # (1.0 + eps) - p rounds the constant to 1.0f and loses the eps guard,
    # diverging from the PyTorch reference at p == 1.
    loss = (npw * t * jnp.log(p + _EPS)
            + (t - 1.0) * jnp.log((1.0 - p) + _EPS))

    if with_mask:
        m = mask_ref[...].astype(jnp.float32)
        contrib = loss * m
    else:
        m = None
        contrib = loss

    if needs_tail_mask:
        # Logical (unclamped) row-block index; rows past valid_rows come from
        # block padding / clamped duplicate blocks and must contribute zero.
        rb = c * inner_steps + i
        rows = (jax.lax.broadcasted_iota(jnp.int32, contrib.shape, 0)
                + rb * block_rows)
        valid = rows < valid_rows
        contrib = jnp.where(valid, contrib, 0.0)      # select -> no NaN leak
        if with_mask:
            m = jnp.where(valid, m, 0.0)

    # Per-step sublane reduce (XLU slot) + tiny (1, C) accumulator RMW instead
    # of a full-tile accumulator read-modify-write.
    acc_loss_ref[...] += jnp.sum(contrib, axis=0, keepdims=True)
    if with_mask:
        acc_mask_ref[...] += jnp.sum(m, axis=0, keepdims=True)

    @pl.when(i == pl.num_programs(1) - 1)
    def _finalize():
        loss_out_ref[0, 0] = jnp.sum(acc_loss_ref[...])
        if with_mask:
            msum_out_ref[0, 0] = jnp.sum(acc_mask_ref[...])


def bce_loss(logits, target, mask=None, *, pos_weight=1.0, reduction="mean",
             num_core_splits=None, max_block_rows=None,
             vmem_input_budget_bytes=24 << 20):
    """Pallas implementation of face_attr BCELoss.forward."""
    if target.shape != logits.shape:
        raise ValueError("target must have the same shape as logits")
    if mask is not None and mask.shape != logits.shape:
        raise ValueError("mask must have the same shape as logits")

    total = int(math.prod(logits.shape))
    with_mask = mask is not None

    # ---- copy-free, lane-dense 2-D view -------------------------------------
    last = logits.shape[-1] if logits.ndim >= 1 else 1
    if logits.ndim >= 2 and last % 128 == 0:
        view_m, view_c = total // last, last            # already lane-dense
    elif total % 128 == 0:
        view_m, view_c = total // 128, 128              # flatten to 128 lanes
    elif logits.ndim >= 2:
        view_m, view_c = total // last, last            # natural view, no copy
    else:
        view_m, view_c = 1, total
    # TODO(synk): extremely wide rows (view_c*dtypes >> VMEM budget) that are
    # not 128-divisible would need lane-dim tiling; not needed for face_attr.

    def _view(x):
        return x.reshape(view_m, view_c)

    ins = [_view(logits), _view(target)]
    if with_mask:
        ins.append(_view(mask))

    # ---- tile sizing (memory-bound: biggest block inside the VMEM budget) ---
    row_align = max(8 * max(1, 4 // x.dtype.itemsize) for x in ins)
    bytes_per_row = view_c * sum(x.dtype.itemsize for x in ins)
    budget_rows = max(1, vmem_input_budget_bytes // (2 * bytes_per_row))
    cap = 4096 if max_block_rows is None else max_block_rows
    br = max(row_align, _round_down(min(cap, budget_rows), row_align))
    if br >= view_m:
        br = view_m                                      # full dim: always legal

    row_blocks = _cdiv(view_m, br)
    splits = (num_core_splits if num_core_splits is not None
              else _default_num_core_splits())
    splits = max(1, min(splits, row_blocks))
    inner = _cdiv(row_blocks, splits)
    needs_tail_mask = (view_m % br != 0) or (splits * inner != row_blocks)
    grid = (splits, inner)

    if splits * inner == row_blocks:
        def in_map(c, i):
            return (c * inner + i, 0)
    else:
        def in_map(c, i):                                # keep block in-bounds
            return (jnp.minimum(c * inner + i, row_blocks - 1), 0)

    in_spec = pl.BlockSpec((br, view_c), in_map)
    pw_spec = pl.BlockSpec(memory_space=pltpu.SMEM)
    out_spec = pl.BlockSpec((1, 1), lambda c, i: (c, 0),
                            memory_space=pltpu.SMEM)

    vmem_limit = int(2 * br * bytes_per_row + 8 * view_c + (8 << 20))

    kernel = functools.partial(_bce_kernel, inner, br, view_m,
                               needs_tail_mask, with_mask)
    pw_arr = jnp.asarray(pos_weight, dtype=jnp.float32).reshape((1,))

    if with_mask:
        out_shape = (jax.ShapeDtypeStruct((splits, 1), jnp.float32),
                     jax.ShapeDtypeStruct((splits, 1), jnp.float32))
        out_specs = [out_spec, out_spec]
        scratch = [pltpu.VMEM((1, view_c), jnp.float32),
                   pltpu.VMEM((1, view_c), jnp.float32)]
        in_specs = [pw_spec, in_spec, in_spec, in_spec]
    else:
        out_shape = jax.ShapeDtypeStruct((splits, 1), jnp.float32)
        out_specs = out_spec
        scratch = [pltpu.VMEM((1, view_c), jnp.float32)]
        in_specs = [pw_spec, in_spec, in_spec]

    result = pl.pallas_call(
        kernel,
        out_shape=out_shape,
        grid_spec=pltpu.PrefetchScalarGridSpec(
            num_scalar_prefetch=0,
            grid=grid,
            in_specs=in_specs,
            out_specs=out_specs,
            scratch_shapes=scratch,
        ),
        compiler_params=pltpu.CompilerParams(
            dimension_semantics=("parallel", "arbitrary"),
            vmem_limit_bytes=vmem_limit,
        ),
    )(pw_arr, *ins)

    if with_mask:
        loss_part, mask_part = result
        loss_sum = jnp.sum(loss_part)
        mask_sum = jnp.sum(mask_part)
    else:
        loss_sum = jnp.sum(result)
        # mask=None behaves like an all-ones mask (the PyTorch module would
        # actually raise on mask.sum() here; this matches the ones-mask intent).
        mask_sum = jnp.asarray(float(total), jnp.float32)

    if reduction == "mean":
        # PyTorch: loss.sum() / max(1, mask.sum())
        return loss_sum / jnp.maximum(jnp.float32(1.0), mask_sum)
    elif reduction == "sum":
        return loss_sum
    # TODO(synk): reduction='none' (per-element loss output) needs a separate
    # elementwise-output kernel; not wired through this global-reduce kernel.
    raise ValueError(f"unsupported reduction: {reduction}")


def _reference(logits, target, mask, pos_weight=1.0, reduction="mean"):
    loss = (-pos_weight * target * jnp.log(logits + _EPS)
            - (1.0 - target) * jnp.log(1.0 - logits + _EPS))
    if mask is not None:
        loss = loss * mask
    if reduction == "sum":
        return loss.sum()
    denom = mask.sum() if mask is not None else jnp.float32(loss.size)
    return loss.sum() / jnp.maximum(1.0, denom)


if __name__ == "__main__":
    key = jax.random.PRNGKey(0)
    k1, k2, k3 = jax.random.split(key, 3)

    # 1) lane-dense path (F = 128), masked, mean reduction.
    N, F = 16, 128
    logits = jax.nn.sigmoid(jax.random.normal(k1, (N, F), jnp.float32))
    target = jax.random.bernoulli(k2, 0.5, (N, F)).astype(jnp.float32)
    mask = jax.random.bernoulli(k3, 0.8, (N, F)).astype(jnp.float32)
    out = jax.block_until_ready(bce_loss(logits, target, mask))
    ref = _reference(logits, target, mask)
    assert jnp.allclose(out, ref, rtol=1e-5, atol=1e-6), (out, ref)

    # 2) small face_attr shape (F = 40, ragged N), pos_weight=2, sum reduction.
    N2, F2 = 13, 40
    logits2 = jax.nn.sigmoid(jax.random.normal(k1, (N2, F2), jnp.float32))
    target2 = jax.random.bernoulli(k2, 0.5, (N2, F2)).astype(jnp.float32)
    mask2 = jax.random.bernoulli(k3, 0.2, (N2, F2)).astype(jnp.float32)
    out2 = jax.block_until_ready(
        bce_loss(logits2, target2, mask2, pos_weight=2.0, reduction="sum"))
    ref2 = _reference(logits2, target2, mask2, pos_weight=2.0, reduction="sum")
    assert jnp.allclose(out2, ref2, rtol=1e-5, atol=1e-4), (out2, ref2)

    # 3) mask=None -> maskless kernel variant; bf16 logits cast in-kernel.
    N3, F3 = 8, 32
    logits3 = jax.nn.sigmoid(
        jax.random.normal(k1, (N3, F3), jnp.float32)).astype(jnp.bfloat16)
    target3 = jax.random.bernoulli(k2, 0.5, (N3, F3)).astype(jnp.float32)
    out3 = jax.block_until_ready(bce_loss(logits3, target3, None, reduction="sum"))
    ref3 = _reference(logits3.astype(jnp.float32), target3, None, reduction="sum")
    assert jnp.allclose(out3, ref3, rtol=1e-5, atol=1e-4), (out3, ref3)

    # 4) multi-block + in-kernel tail mask + forced 2-way core split
    #    (exercises partial last block and clamped duplicate block).
    N4, F4 = 37, 40
    logits4 = jax.nn.sigmoid(jax.random.normal(k1, (N4, F4), jnp.float32))
    target4 = jax.random.bernoulli(k2, 0.5, (N4, F4)).astype(jnp.float32)
    mask4 = jax.random.bernoulli(k3, 0.6, (N4, F4)).astype(jnp.float32)
    out4 = jax.block_until_ready(
        bce_loss(logits4, target4, mask4, pos_weight=1.5, reduction="mean",
                 num_core_splits=2, max_block_rows=8))
    ref4 = _reference(logits4, target4, mask4, pos_weight=1.5, reduction="mean")
    assert jnp.allclose(out4, ref4, rtol=1e-5, atol=1e-5), (out4, ref4)

    print("KERNEL_OK")
</pallas_src>

<mosaic_0001>
module attributes {stable_mosaic.version = 11 : i64} {
  func.func @_bce_kernel(%arg0: i32, %arg1: i32, %arg2: memref<1xf32, #tpu.memory_space<smem>>, %arg3: memref<16x128xf32, #tpu.memory_space<vmem>>, %arg4: memref<16x128xf32, #tpu.memory_space<vmem>>, %arg5: memref<16x128xf32, #tpu.memory_space<vmem>>, %arg6: memref<1x1xf32, #tpu.memory_space<smem>>, %arg7: memref<1x1xf32, #tpu.memory_space<smem>>, %arg8: memref<1x128xf32, #tpu.memory_space<vmem>>, %arg9: memref<1x128xf32, #tpu.memory_space<vmem>>) attributes {dimension_semantics = [#tpu.dimension_semantics<parallel>, #tpu.dimension_semantics<arbitrary>], iteration_bounds = array<i64: 1, 1>, scalar_prefetch = 0 : i64, scratch_operands = 2 : i64, tpu.core_type = #tpu.core_type<tc>, window_params = [{transform_indices = @transform_0, window_bounds = array<i64: 1>}, {transform_indices = @transform_1, window_bounds = array<i64: 16, 128>}, {transform_indices = @transform_2, window_bounds = array<i64: 16, 128>}, {transform_indices = @transform_3, window_bounds = array<i64: 16, 128>}, {transform_indices = @transform_4, window_bounds = array<i64: 1, 1>}, {transform_indices = @transform_5, window_bounds = array<i64: 1, 1>}]} {
    %c0_i32 = arith.constant 0 : i32
    %0 = arith.cmpi eq, %arg1, %c0_i32 : i32
    %1 = arith.extui %0 : i1 to i32
    %c0_i32_0 = arith.constant 0 : i32
    %2 = arith.cmpi ne, %1, %c0_i32_0 : i32
    scf.if %2 {
      %cst_23 = arith.constant 0.000000e+00 : f32
      %37 = vector.broadcast %cst_23 : f32 to vector<1x128xf32>
      %c0_24 = arith.constant 0 : index
      %c0_25 = arith.constant 0 : index
      %38 = vector.load %arg8[%c0_24, %c0_25] : memref<1x128xf32, #tpu.memory_space<vmem>>, vector<1x128xf32>
      tpu.vector_store %arg8[%c0_24, %c0_25], %37 {strides = array<i32>} : memref<1x128xf32, #tpu.memory_space<vmem>>, vector<1x128xf32>,
      %cst_26 = arith.constant 0.000000e+00 : f32
      %39 = vector.broadcast %cst_26 : f32 to vector<1x128xf32>
      %c0_27 = arith.constant 0 : index
      %c0_28 = arith.constant 0 : index
      %40 = vector.load %arg9[%c0_27, %c0_28] : memref<1x128xf32, #tpu.memory_space<vmem>>, vector<1x128xf32>
      tpu.vector_store %arg9[%c0_27, %c0_28], %39 {strides = array<i32>} : memref<1x128xf32, #tpu.memory_space<vmem>>, vector<1x128xf32>,
    } else {
    }
    %c0 = arith.constant 0 : index
    %c0_1 = arith.constant 0 : index
    %3 = vector.load %arg3[%c0, %c0_1] : memref<16x128xf32, #tpu.memory_space<vmem>>, vector<16x128xf32>
    %c0_2 = arith.constant 0 : index
    %c0_3 = arith.constant 0 : index
    %4 = vector.load %arg4[%c0_2, %c0_3] : memref<16x128xf32, #tpu.memory_space<vmem>>, vector<16x128xf32>
    %c0_4 = arith.constant 0 : index
    %5 = memref.load %arg2[%c0_4] : memref<1xf32, #tpu.memory_space<smem>>
    %cst = arith.constant 0.000000e+00 : f32
    %6 = arith.subf %cst, %5 : f32
    %7 = vector.broadcast %6 : f32 to vector<16x128xf32>
    %8 = arith.mulf %7, %4 : vector<16x128xf32>
    %cst_5 = arith.constant 9.99999996E-13 : f32
    %9 = vector.broadcast %cst_5 : f32 to vector<16x128xf32>
    %10 = arith.addf %3, %9 : vector<16x128xf32>
    %11 = math.log %10 : vector<16x128xf32>
    %12 = arith.mulf %8, %11 : vector<16x128xf32>
    %cst_6 = arith.constant 1.000000e+00 : f32
    %13 = vector.broadcast %cst_6 : f32 to vector<16x128xf32>
    %14 = arith.subf %4, %13 : vector<16x128xf32>
    %cst_7 = arith.constant 1.000000e+00 : f32
    %15 = vector.broadcast %cst_7 : f32 to vector<16x128xf32>
    %16 = arith.subf %15, %3 : vector<16x128xf32>
    %cst_8 = arith.constant 9.99999996E-13 : f32
    %17 = vector.broadcast %cst_8 : f32 to vector<16x128xf32>
    %18 = arith.addf %16, %17 : vector<16x128xf32>
    %19 = math.log %18 : vector<16x128xf32>
    %20 = arith.mulf %14, %19 : vector<16x128xf32>
    %21 = arith.addf %12, %20 : vector<16x128xf32>
    %c0_9 = arith.constant 0 : index
    %c0_10 = arith.constant 0 : index
    %22 = vector.load %arg5[%c0_9, %c0_10] : memref<16x128xf32, #tpu.memory_space<vmem>>, vector<16x128xf32>
    %23 = arith.mulf %21, %22 : vector<16x128xf32>
    %c0_11 = arith.constant 0 : index
    %c0_12 = arith.constant 0 : index
    %24 = vector.load %arg8[%c0_11, %c0_12] : memref<1x128xf32, #tpu.memory_space<vmem>>, vector<1x128xf32>
    %cst_13 = arith.constant dense<0.000000e+00> : vector<128xf32>
    %25 = vector.multi_reduction <add>, %23, %cst_13 [0] : vector<16x128xf32> to vector<128xf32>
    %26 = vector.shape_cast %25 : vector<128xf32> to vector<1x128xf32>
    %27 = arith.addf %24, %26 : vector<1x128xf32>
    %c0_14 = arith.constant 0 : index
    %c0_15 = arith.constant 0 : index
    %28 = vector.load %arg8[%c0_14, %c0_15] : memref<1x128xf32, #tpu.memory_space<vmem>>, vector<1x128xf32>
    tpu.vector_store %arg8[%c0_14, %c0_15], %27 {strides = array<i32>} : memref<1x128xf32, #tpu.memory_space<vmem>>, vector<1x128xf32>,
    %c0_16 = arith.constant 0 : index
    %c0_17 = arith.constant 0 : index
    %29 = vector.load %arg9[%c0_16, %c0_17] : memref<1x128xf32, #tpu.memory_space<vmem>>, vector<1x128xf32>
    %cst_18 = arith.constant dense<0.000000e+00> : vector<128xf32>
    %30 = vector.multi_reduction <add>, %22, %cst_18 [0] : vector<16x128xf32> to vector<128xf32>
    %31 = vector.shape_cast %30 : vector<128xf32> to vector<1x128xf32>
    %32 = arith.addf %29, %31 : vector<1x128xf32>
    %c0_19 = arith.constant 0 : index
    %c0_20 = arith.constant 0 : index
    %33 = vector.load %arg9[%c0_19, %c0_20] : memref<1x128xf32, #tpu.memory_space<vmem>>, vector<1x128xf32>
    tpu.vector_store %arg9[%c0_19, %c0_20], %32 {strides = array<i32>} : memref<1x128xf32, #tpu.memory_space<vmem>>, vector<1x128xf32>,
    %c0_i32_21 = arith.constant 0 : i32
    %34 = arith.cmpi eq, %arg1, %c0_i32_21 : i32
    %35 = arith.extui %34 : i1 to i32
    %c0_i32_22 = arith.constant 0 : i32
    %36 = arith.cmpi ne, %35, %c0_i32_22 : i32
    scf.if %36 {
      %c0_23 = arith.constant 0 : index
      %c0_24 = arith.constant 0 : index
      %37 = vector.load %arg8[%c0_23, %c0_24] : memref<1x128xf32, #tpu.memory_space<vmem>>, vector<1x128xf32>
      %38 = vector.shape_cast %37 : vector<1x128xf32> to vector<1x1x128xf32>
      %cst_25 = arith.constant dense<0.000000e+00> : vector<1xf32>
      %39 = vector.multi_reduction <add>, %38, %cst_25 [1, 2] : vector<1x1x128xf32> to vector<1xf32>
      %40 = vector.shape_cast %39 : vector<1xf32> to vector<1x1x1xf32>
      %41 = vector.extract %40[0, 0, 0] : f32 from vector<1x1x1xf32>
      %c0_26 = arith.constant 0 : index
      %c0_27 = arith.constant 0 : index
      %42 = memref.load %arg6[%c0_26, %c0_27] : memref<1x1xf32, #tpu.memory_space<smem>>
      memref.store %41, %arg6[%c0_26, %c0_27] : memref<1x1xf32, #tpu.memory_space<smem>>
      %c0_28 = arith.constant 0 : index
      %c0_29 = arith.constant 0 : index
      %43 = vector.load %arg9[%c0_28, %c0_29] : memref<1x128xf32, #tpu.memory_space<vmem>>, vector<1x128xf32>
      %44 = vector.shape_cast %43 : vector<1x128xf32> to vector<1x1x128xf32>
      %cst_30 = arith.constant dense<0.000000e+00> : vector<1xf32>
      %45 = vector.multi_reduction <add>, %44, %cst_30 [1, 2] : vector<1x1x128xf32> to vector<1xf32>
      %46 = vector.shape_cast %45 : vector<1xf32> to vector<1x1x1xf32>
      %47 = vector.extract %46[0, 0, 0] : f32 from vector<1x1x1xf32>
      %c0_31 = arith.constant 0 : index
      %c0_32 = arith.constant 0 : index
      %48 = memref.load %arg7[%c0_31, %c0_32] : memref<1x1xf32, #tpu.memory_space<smem>>
      memref.store %47, %arg7[%c0_31, %c0_32] : memref<1x1xf32, #tpu.memory_space<smem>>
    } else {
    }
    return
  }
  func.func @transform_0(%arg0: i32, %arg1: i32) -> i32 {
    %c0_i32 = arith.constant 0 : i32
    %c0_i32_0 = arith.constant 0 : i32
    return %c0_i32 : i32
  }
  func.func @transform_1(%arg0: i32, %arg1: i32) -> (i32, i32) {
    %c1_i32 = arith.constant 1 : i32
    %0 = arith.muli %arg0, %c1_i32 : i32
    %1 = arith.addi %0, %arg1 : i32
    %c0_i32 = arith.constant 0 : i32
    %c0_i32_0 = arith.constant 0 : i32
    return %1, %c0_i32 : i32, i32
  }
  func.func @transform_2(%arg0: i32, %arg1: i32) -> (i32, i32) {
    %c1_i32 = arith.constant 1 : i32
    %0 = arith.muli %arg0, %c1_i32 : i32
    %1 = arith.addi %0, %arg1 : i32
    %c0_i32 = arith.constant 0 : i32
    %c0_i32_0 = arith.constant 0 : i32
    return %1, %c0_i32 : i32, i32
  }
  func.func @transform_3(%arg0: i32, %arg1: i32) -> (i32, i32) {
    %c1_i32 = arith.constant 1 : i32
    %0 = arith.muli %arg0, %c1_i32 : i32
    %1 = arith.addi %0, %arg1 : i32
    %c0_i32 = arith.constant 0 : i32
    %c0_i32_0 = arith.constant 0 : i32
    return %1, %c0_i32 : i32, i32
  }
  func.func @transform_4(%arg0: i32, %arg1: i32) -> (i32, i32) {
    %c0_i32 = arith.constant 0 : i32
    %c0_i32_0 = arith.constant 0 : i32
    return %arg0, %c0_i32 : i32, i32
  }
  func.func @transform_5(%arg0: i32, %arg1: i32) -> (i32, i32) {
    %c0_i32 = arith.constant 0 : i32
    %c0_i32_0 = arith.constant 0 : i32
    return %arg0, %c0_i32 : i32, i32
  }
}

</mosaic_0001>

<llo_original>
// kernel: tpu_custom_call.1
$region0: #{tpu_custom_call.1}
  #allocation0 [shape = 'u32[]', space=smem, size = 0x4, offset = 0x4, fixed_abs, tag = 'smem constant byte address 0x4 - core index']
  #allocation1 [shape = 'u32[144,128]{1,0:T(1,128)}', space=vmem, size = 0x12000, scoped, tag = 'internal scratch']
  #allocation2 [shape = 'f32[1,128]{1,0:T(1,128)}', space=vmem, size = 0x200, scoped, tag = 'scratch operand']
  #allocation3 [shape = 'f32[1,128]{1,0:T(1,128)}', space=vmem, size = 0x200, scoped, tag = 'scratch operand']
  #allocation4 [shape = 'f32[1]{0:T(128)S(6)}', space=smem, size = 0x200, scoped, tag = 'scoped memory for tpu_custom_call.1']
  %s0 = inlined_call_operand.<no memory space> [shape: f32[1], index: 0, kind: input, shape index: {}]
  %s1 = inlined_call_operand.hbm [shape: f32[16,128], index: 1, kind: input, shape index: {}]
  %s2 = inlined_call_operand.hbm [shape: f32[16,128], index: 2, kind: input, shape index: {}]
  %s3 = inlined_call_operand.hbm [shape: f32[16,128], index: 3, kind: input, shape index: {}]
  %s4 = inlined_call_operand.hbm [shape: f32[1,1], index: 4, kind: output, shape index: {0}]
  %s5 = inlined_call_operand.hbm [shape: f32[1,1], index: 5, kind: output, shape index: {1}]
  %6 = xla_tuple %s4, %s5
  %s7 = sld [smem:[#allocation0]]
  $region54: #{tpu_custom_call.1} parent=0
    _
  %s9 = ssub.s32 1, %s7
  %s10 = scalar_select 0, %s9, %s7
  %11 = sst [smem:[#allocation4]] %s0
  $region1: #{tpu_custom_call.1} parent=0
    #allocation5 [shape = 'u8[8192]{0}', space=vmem, size = 0x2000, scoped, tag = 'input window, operand 1, single buffered']
    #allocation6 [shape = 's32[1]{0}', space=sflag, size = 0x4, scoped, tag = 'scoped memory for tpu_custom_call.1']
    #allocation7 [shape = 's32[1]{0}', space=sflag, size = 0x4, scoped, tag = 'scoped memory for tpu_custom_call.1']
    #allocation8 [shape = 'u8[8192]{0}', space=vmem, size = 0x2000, scoped, tag = 'input window, operand 2, single buffered']
    #allocation9 [shape = 's32[1]{0}', space=sflag, size = 0x4, scoped, tag = 'scoped memory for tpu_custom_call.1']
    #allocation10 [shape = 'u8[8192]{0}', space=vmem, size = 0x2000, scoped, tag = 'input window, operand 3, single buffered']
    #allocation11 [shape = 'u8[512]{0}', space=smem, size = 0x200, scoped, tag = 'output window, operand 0, single buffered']
    #allocation12 [shape = 'u8[512]{0}', space=smem, size = 0x200, scoped, tag = 'output window, operand 1, single buffered']
    #allocation13 [shape = 's32[1]{0}', space=sflag, size = 0x4, scoped, tag = 'scoped memory for tpu_custom_call.1']
    %12 = vsyncpa [#allocation6], 0
    %13 = vsyncpa [#allocation9], 0
    %14 = vsyncpa [#allocation7], 0
    %15 = vsyncpa [#allocation13], 0
    // Predicated region
    $region2: #{tpu_custom_call.1} parent=1 // pred_check
      _
    $region3: #{tpu_custom_call.1} parent=1 // pred_check_branch
      %17 = sbr.rel (0) target = $region5
    $region4: #{tpu_custom_call.1} parent=1 // pred_region
      _
    $region5: #{tpu_custom_call.1} parent=1 // pred_fallthru
      _
    // Predicated region
    $region6: #{tpu_custom_call.1} parent=1 // pred_check
      _
    $region7: #{tpu_custom_call.1} parent=1 // pred_check_branch
      %19 = sbr.rel (0) target = $region9
    $region8: #{tpu_custom_call.1} parent=1 // pred_region
      %s20 = sadd.s32 0, 0
      %s21 = smul.u32 2, %s20
      %s23 = ssub.s32 256, 256
      %24 = vsyncadd [#allocation6], %s23
      %s25 = smul.addr %s21, 128
      %s26 = scalar_lea.hbm %s1, %s25
      %s27 = sshll.u32 [#allocation5], 4
      %s28 = int_to_ptr.vmem [resolvable:$true] %s27
      %33 = dma.hbm_to_vmem [thread:$0]  %s26, 256, %s28, [#allocation6], 128, 128, 8
    $region9: #{tpu_custom_call.1} parent=1 // pred_fallthru
      _
    // Predicated region
    $region10: #{tpu_custom_call.1} parent=1 // pred_check
      _
    $region11: #{tpu_custom_call.1} parent=1 // pred_check_branch
      %35 = sbr.rel (0) target = $region13
    $region12: #{tpu_custom_call.1} parent=1 // pred_region
      %s36 = sadd.s32 0, 0
      %s37 = smul.u32 2, %s36
      %s39 = ssub.s32 256, 256
      %40 = vsyncadd [#allocation9], %s39
      %s41 = smul.addr %s37, 128
      %s42 = scalar_lea.hbm %s2, %s41
      %s43 = sshll.u32 [#allocation8], 4
      %s44 = int_to_ptr.vmem [resolvable:$true] %s43
      %49 = dma.hbm_to_vmem [thread:$0]  %s42, 256, %s44, [#allocation9], 128, 128, 8
    $region13: #{tpu_custom_call.1} parent=1 // pred_fallthru
      _
    // Predicated region
    $region14: #{tpu_custom_call.1} parent=1 // pred_check
      _
    $region15: #{tpu_custom_call.1} parent=1 // pred_check_branch
      %51 = sbr.rel (0) target = $region17
    $region16: #{tpu_custom_call.1} parent=1 // pred_region
      %s52 = sadd.s32 0, 0
      %s53 = smul.u32 2, %s52
      %s55 = ssub.s32 256, 256
      %56 = vsyncadd [#allocation9], %s55
      %s57 = smul.addr %s53, 128
      %s58 = scalar_lea.hbm %s3, %s57
      %s59 = sshll.u32 [#allocation10], 4
      %s60 = int_to_ptr.vmem [resolvable:$true] %s59
      %65 = dma.hbm_to_vmem [thread:$0]  %s58, 256, %s60, [#allocation9], 128, 128, 8
    $region17: #{tpu_custom_call.1} parent=1 // pred_fallthru
      _
    // Predicated region
    $region18: #{tpu_custom_call.1} parent=1 // pred_check
      _
    $region19: #{tpu_custom_call.1} parent=1 // pred_check_branch
      %67 = sbr.rel (0) target = $region21
    $region20: #{tpu_custom_call.1} parent=1 // pred_region
      %68 = dma.done [#allocation6], 256
    $region21: #{tpu_custom_call.1} parent=1 // pred_fallthru
      _
    // Predicated region
    $region22: #{tpu_custom_call.1} parent=1 // pred_check
      _
    $region23: #{tpu_custom_call.1} parent=1 // pred_check_branch
      %70 = sbr.rel (0) target = $region25
    $region24: #{tpu_custom_call.1} parent=1 // pred_region
      %71 = dma.done [#allocation9], 256
    $region25: #{tpu_custom_call.1} parent=1 // pred_fallthru
      _
    // Predicated region
    $region26: #{tpu_custom_call.1} parent=1 // pred_check
      _
    $region27: #{tpu_custom_call.1} parent=1 // pred_check_branch
      %73 = sbr.rel (0) target = $region29
    $region28: #{tpu_custom_call.1} parent=1 // pred_region
      %74 = dma.done [#allocation9], 256
    $region29: #{tpu_custom_call.1} parent=1 // pred_fallthru
      _
    %s75 = sadd.s32 0, 0
    %s76 = smul.u32 2, %s75
    %s77 = sadd.s32 0, 0
    %s78 = smul.u32 2, %s77
    %s79 = sadd.s32 0, 0
    %s80 = smul.u32 2, %s79
    %p81 = scmp.eq.s32.totalorder 0, 0
    // Predicated region
    $region30: #{tpu_custom_call.1} parent=1 // pred_check
      %p82 = pneg %p81
    $region31: #{tpu_custom_call.1} parent=1 // pred_check_branch
      %84 = sbr.rel (%p82) target = $region33
    $region32: #{tpu_custom_call.1} parent=1 // pred_region
      %85 = vst [vmem:[#allocation2] sm:$0x1] 0.0
      %86 = vst [vmem:[#allocation3] sm:$0x1] 0.0
    $region33: #{tpu_custom_call.1} parent=1 // pred_fallthru
      _
    %v87 = vld [vmem:[#allocation5] sm:$0xff]
    %v88 = vld [vmem:[#allocation5 + $0x8] sm:$0xff]
    %v89 = vld [vmem:[#allocation8] sm:$0xff]
    %v90 = vld [vmem:[#allocation8 + $0x8] sm:$0xff]
    %s91 = sld [smem:[#allocation4]]
    %s92 = ssub.f32 0.0, %s91
    %v93 = vstv %s92
    %v94 = vmul.f32 %v93, %v89
    %v95 = vmul.f32 %v93, %v90
    %v96 = vadd.f32 %v87, 1e-12
    %v97 = vadd.f32 %v88, 1e-12
    %v98 = vlog2.pop %v96
    %v99 = vmul.f32 %v98, 0.6931472
    %v100 = vlog2.pop %v97
    %v101 = vmul.f32 %v100, 0.6931472
    %v102 = vmul.f32 %v94, %v99
    %v103 = vmul.f32 %v95, %v101
    %v104 = vsub.f32 %v89, 1.0
    %v105 = vsub.f32 %v90, 1.0
    %v106 = vsub.f32 1.0, %v87
    %v107 = vsub.f32 1.0, %v88
    %v108 = vadd.f32 %v106, 1e-12
    %v109 = vadd.f32 %v107, 1e-12
    %v110 = vlog2.pop %v108
    %v111 = vmul.f32 %v110, 0.6931472
    %v112 = vlog2.pop %v109
    %v113 = vmul.f32 %v112, 0.6931472
    %v114 = vmul.f32 %v104, %v111
    %v115 = vmul.f32 %v105, %v113
    %v116 = vadd.f32 %v102, %v114
    %v117 = vadd.f32 %v103, %v115
    %v118 = vld [vmem:[#allocation10] sm:$0xff]
    %v119 = vld [vmem:[#allocation10 + $0x8] sm:$0xff]
    %v120 = vmul.f32 %v116, %v118
    %v121 = vmul.f32 %v117, %v119
    %v122 = vld [vmem:[#allocation2] sm:$0x1]
    %v123 = vadd.f32 %v120, %v121
    %v124 = vrot.slane %v123, 4
    %v125 = vadd.f32 %v123, %v124
    %v126 = vrot.slane %v125, 2
    %v127 = vadd.f32 %v125, %v126
    %v128 = vrot.slane %v127, 1
    %v129 = vadd.f32 %v127, %v128
    %v130 = vadd.f32 %v122, %v129
    %131 = vst [vmem:[#allocation2] sm:$0x1] %v130
    %v132 = vld [vmem:[#allocation3] sm:$0x1]
    %v133 = vadd.f32 %v118, %v119
    %v134 = vrot.slane %v133, 4
    %v135 = vadd.f32 %v133, %v134
    %v136 = vrot.slane %v135, 2
    %v137 = vadd.f32 %v135, %v136
    %v138 = vrot.slane %v137, 1
    %v139 = vadd.f32 %v137, %v138
    %v140 = vadd.f32 %v132, %v139
    %141 = vst [vmem:[#allocation3] sm:$0x1] %v140
    // Predicated region
    $region34: #{tpu_custom_call.1} parent=1 // pred_check
      %p142 = pneg %p81
    $region35: #{tpu_custom_call.1} parent=1 // pred_check_branch
      %144 = sbr.rel (%p142) target = $region37
    $region36: #{tpu_custom_call.1} parent=1 // pred_region
      %v145 = vld [vmem:[#allocation2] sm:$0x1]
      %vm146 = vcmask 1040384
      %v147 = vsel %vm146, %v145, 0.0
      %148 = vadd.xlane.f32.xlu0 %v147
      %v149 = vpop.xlane.xlu0 %148
      %v150 = vrot.slane %v149, 4
      %v151 = vadd.f32 %v149, %v150
      %v152 = vrot.slane %v151, 2
      %v153 = vadd.f32 %v151, %v152
      %v154 = vrot.slane %v153, 1
      %v155 = vadd.f32 %v153, %v154
      %s156 = vtos %v155
      %s157 = scalar_lea.smem [#allocation11], 0
      %158 = sst [smem:[%s157]] %s156
      %v159 = vld [vmem:[#allocation3] sm:$0x1]
      %v160 = vsel %vm146, %v159, 0.0
      %161 = vadd.xlane.f32.xlu0 %v160
      %v162 = vpop.xlane.xlu0 %161
      %v163 = vrot.slane %v162, 4
      %v164 = vadd.f32 %v162, %v163
      %v165 = vrot.slane %v164, 2
      %v166 = vadd.f32 %v164, %v165
      %v167 = vrot.slane %v166, 1
      %v168 = vadd.f32 %v166, %v167
      %s169 = vtos %v168
      %s170 = scalar_lea.smem [#allocation12], 0
      %171 = sst [smem:[%s170]] %s169
    $region37: #{tpu_custom_call.1} parent=1 // pred_fallthru
      _
    // Predicated region
    $region38: #{tpu_custom_call.1} parent=1 // pred_check
      _
    $region39: #{tpu_custom_call.1} parent=1 // pred_check_branch
      %173 = sbr.rel (0) target = $region41
    $region40: #{tpu_custom_call.1} parent=1 // pred_region
      %s175 = ssub.s32 16, 16
      %176 = vsyncadd [#allocation7], %s175
      %179 = dma.smem_to_hbm [#allocation11], 16, %s4, [#allocation7]
    $region41: #{tpu_custom_call.1} parent=1 // pred_fallthru
      _
    // Predicated region
    $region42: #{tpu_custom_call.1} parent=1 // pred_check
      _
    $region43: #{tpu_custom_call.1} parent=1 // pred_check_branch
      %181 = sbr.rel (0) target = $region45
    $region44: #{tpu_custom_call.1} parent=1 // pred_region
      %s183 = ssub.s32 16, 16
      %184 = vsyncadd [#allocation13], %s183
      %187 = dma.smem_to_hbm [#allocation12], 16, %s5, [#allocation13]
    $region45: #{tpu_custom_call.1} parent=1 // pred_fallthru
      _
    // Predicated region
    $region46: #{tpu_custom_call.1} parent=1 // pred_check
      _
    $region47: #{tpu_custom_call.1} parent=1 // pred_check_branch
      %189 = sbr.rel (0) target = $region49
    $region48: #{tpu_custom_call.1} parent=1 // pred_region
      %190 = dma.done [#allocation7], 16
    $region49: #{tpu_custom_call.1} parent=1 // pred_fallthru
      _
    // Predicated region
    $region50: #{tpu_custom_call.1} parent=1 // pred_check
      _
    $region51: #{tpu_custom_call.1} parent=1 // pred_check_branch
      %192 = sbr.rel (0) target = $region53
    $region52: #{tpu_custom_call.1} parent=1 // pred_region
      %193 = dma.done [#allocation13], 16
    $region53: #{tpu_custom_call.1} parent=1 // pred_fallthru
      _
    %194 = sfence
    %195 = vsyncpa [#allocation6], 1
    %196 = vsyncpa [#allocation9], 1
    %197 = vsyncpa [#allocation7], 1
    %198 = vsyncpa [#allocation13], 1

</llo_original>
